<compile_context>
chip_gen: v5e
topology: v5e:2x2
jax: 0.10.0
libtpu: 0.0.40
codegen_flags: <defaults>
</compile_context>

<pallas_src>
import jax
import jax.numpy as jnp
from jax.experimental import pallas as pl
from jax.experimental.pallas import tpu as pltpu


def _fcc_kernel(x_ref, w_ref, b_ref, o_ref):
    """One row tile: out = sigmoid(X_tile @ W^T + b)."""
    # In-kernel bf16 cast (x is read from HBM once at its native dtype; the cast
    # hides under the MXU op). f32 accumulation via preferred_element_type.
    x_bf = x_ref[...].astype(jnp.bfloat16)
    acc = jnp.dot(x_bf, w_ref[...], preferred_element_type=jnp.float32)
    acc = acc + b_ref[...]
    # Sigmoid runs on the EUP -> essentially free next to the matmul.
    o_ref[...] = jax.nn.sigmoid(acc).astype(o_ref.dtype)


def prepare_fcc_params(weight, bias):
    """One-time parameter prep (do at module init, NOT per forward call).

    weight: [F_out, F_in]  (PyTorch nn.Linear convention)
    bias:   [F_out]
    Returns (W^T as [F_in, F_out] bf16, bias as [1, F_out] f32).
    """
    w_t = jnp.asarray(weight).T.astype(jnp.bfloat16)
    b2d = jnp.asarray(bias).astype(jnp.float32).reshape(1, -1)
    return w_t, b2d


def _pick_tile_n(n):
    """Row-tile size: 8-sublane aligned, large enough to amortize per-step
    overhead, small enough that the grid keeps >= 2 steps (v7x has 2 TCs)."""
    if n >= 1024:
        return 512
    if n >= 256:
        return 128
    # Small batch: split into (up to) two near-equal, 8-aligned tiles.
    return max(8, (((n + 1) // 2) + 7) // 8 * 8)


def fcc_forward(x, w_t, b2d, *, tile_n=None, out_dtype=jnp.float32):
    """FCC forward.

    x:    [..., F_in] float features
    w_t:  [F_in, F_out] bf16 (from prepare_fcc_params)
    b2d:  [1, F_out] f32    (from prepare_fcc_params)
    returns [..., F_out] in out_dtype (default f32; pass jnp.bfloat16 to halve
    the writeback traffic — sigmoid outputs in [0,1] lose negligible precision).
    """
    orig_shape = x.shape
    f_in = orig_shape[-1]
    f_out = w_t.shape[1]

    x2 = x.reshape(-1, f_in)
    n = x2.shape[0]

    if tile_n is None:
        tile_n = _pick_tile_n(n)
    grid = (pl.cdiv(n, tile_n),)  # partial tail block -> stores masked by Pallas

    out_itemsize = jnp.dtype(out_dtype).itemsize
    # Advisory cost estimate for XLA's scheduler around the custom call.
    cost = pl.CostEstimate(
        flops=2 * n * f_in * f_out,
        transcendentals=n * f_out,  # one EUP exp per output element (sigmoid)
        bytes_accessed=(x2.size * x2.dtype.itemsize
                        + w_t.size * w_t.dtype.itemsize
                        + b2d.size * b2d.dtype.itemsize
                        + n * f_out * out_itemsize),
    )
    # VMEM budget: 2x X tile + 2x out tile (double-buffered) + resident W + bias.
    vmem_bytes = (2 * tile_n * f_in * x2.dtype.itemsize
                  + 2 * tile_n * f_out * out_itemsize
                  + 2 * f_in * f_out * w_t.dtype.itemsize
                  + 2 * f_out * 4)
    # Raise the scoped limit past the 16/32 MiB default when needed; stay well
    # below v7x's 64 MiB physical VMEM.
    vmem_limit = int(min(max(2 * vmem_bytes, 16 * 1024 * 1024), 48 * 1024 * 1024))

    out = pl.pallas_call(
        _fcc_kernel,
        out_shape=jax.ShapeDtypeStruct((n, f_out), out_dtype),
        grid_spec=pltpu.PrefetchScalarGridSpec(
            num_scalar_prefetch=0,
            grid=grid,
            in_specs=[
                pl.BlockSpec((tile_n, f_in), lambda i: (i, 0)),   # X row tile
                pl.BlockSpec((f_in, f_out), lambda i: (0, 0)),    # W^T (resident)
                pl.BlockSpec((1, f_out), lambda i: (0, 0)),       # bias (resident)
            ],
            out_specs=pl.BlockSpec((tile_n, f_out), lambda i: (i, 0)),
        ),
        compiler_params=pltpu.CompilerParams(
            dimension_semantics=("parallel",),
            vmem_limit_bytes=vmem_limit,
        ),
        cost_estimate=cost,
    )(x2, w_t, b2d)

    return out.reshape(*orig_shape[:-1], f_out)


if __name__ == "__main__":
    # Shapes consistent with FCC(in_channels=64, out_channels=128); 200 rows
    # exercises the non-divisible (masked-tail) path.
    N, F_IN, F_OUT = 200, 64, 128

    key = jax.random.PRNGKey(0)
    kx, kw, kb = jax.random.split(key, 3)

    x = jax.random.normal(kx, (N, F_IN), dtype=jnp.float32)

    # PyTorch nn.Linear default init: U(-1/sqrt(F_in), 1/sqrt(F_in)).
    scale = 1.0 / jnp.sqrt(F_IN)
    weight = jax.random.uniform(kw, (F_OUT, F_IN), jnp.float32, -scale, scale)
    bias = jax.random.uniform(kb, (F_OUT,), jnp.float32, -scale, scale)

    # One-time parameter prep (module-init analogue), then the fused kernel call.
    w_t, b2d = prepare_fcc_params(weight, bias)
    out = fcc_forward(x, w_t, b2d)
    out = jax.block_until_ready(out)

    ref = jax.nn.sigmoid(x @ weight.T + bias[None, :])
    assert out.shape == (N, F_OUT)
    # bf16 MXU inputs with f32 accumulation + sigmoid squashing -> loose tolerance.
    assert jnp.allclose(out, ref, atol=2e-2, rtol=2e-2), float(
        jnp.max(jnp.abs(out - ref))
    )

    print("KERNEL_OK")
</pallas_src>

<mosaic_0001>
module attributes {stable_mosaic.version = 11 : i64} {
  func.func @_fcc_kernel(%arg0: i32, %arg1: memref<104x64xf32, #tpu.memory_space<vmem>>, %arg2: memref<64x128xbf16, #tpu.memory_space<vmem>>, %arg3: memref<1x128xf32, #tpu.memory_space<vmem>>, %arg4: memref<104x128xf32, #tpu.memory_space<vmem>>) attributes {dimension_semantics = [#tpu.dimension_semantics<parallel>], iteration_bounds = array<i64: 2>, scalar_prefetch = 0 : i64, scratch_operands = 0 : i64, tpu.core_type = #tpu.core_type<tc>, window_params = [{transform_indices = @transform_0, window_bounds = array<i64: 104, 64>}, {pipeline_mode = #tpu.pipeline_mode<synchronous>, transform_indices = @transform_1, window_bounds = array<i64: 64, 128>}, {pipeline_mode = #tpu.pipeline_mode<synchronous>, transform_indices = @transform_2, window_bounds = array<i64: 1, 128>}, {transform_indices = @transform_3, window_bounds = array<i64: 104, 128>}]} {
    %c0 = arith.constant 0 : index
    %c0_0 = arith.constant 0 : index
    %0 = vector.load %arg1[%c0, %c0_0] : memref<104x64xf32, #tpu.memory_space<vmem>>, vector<104x64xf32>
    %1 = arith.truncf %0 : vector<104x64xf32> to vector<104x64xbf16>
    %c0_1 = arith.constant 0 : index
    %c0_2 = arith.constant 0 : index
    %2 = vector.load %arg2[%c0_1, %c0_2] : memref<64x128xbf16, #tpu.memory_space<vmem>>, vector<64x128xbf16>
    %cst = arith.constant dense<0.000000e+00> : vector<104x128xf32>
    %3 = tpu.matmul %1, %2, %cst {dimension_numbers = #tpu.dot_dimension_numbers<[1], [0], [0], [1], [0, 0, 1, 1], [], []>} : vector<104x64xbf16>, vector<64x128xbf16>, vector<104x128xf32> -> vector<104x128xf32>
    %c0_3 = arith.constant 0 : index
    %c0_4 = arith.constant 0 : index
    %4 = vector.load %arg3[%c0_3, %c0_4] : memref<1x128xf32, #tpu.memory_space<vmem>>, vector<1x128xf32>
    %5 = vector.broadcast %4 : vector<1x128xf32> to vector<104x128xf32>
    %6 = arith.addf %3, %5 : vector<104x128xf32>
    %7 = arith.negf %6 : vector<104x128xf32>
    %8 = math.exp %7 : vector<104x128xf32>
    %cst_5 = arith.constant 1.000000e+00 : f32
    %9 = vector.broadcast %cst_5 : f32 to vector<104x128xf32>
    %10 = arith.addf %9, %8 : vector<104x128xf32>
    %11 = arith.divf %9, %10 : vector<104x128xf32>
    %c0_6 = arith.constant 0 : index
    %c0_7 = arith.constant 0 : index
    %12 = vector.load %arg4[%c0_6, %c0_7] : memref<104x128xf32, #tpu.memory_space<vmem>>, vector<104x128xf32>
    tpu.vector_store %arg4[%c0_6, %c0_7], %11 {strides = array<i32>} : memref<104x128xf32, #tpu.memory_space<vmem>>, vector<104x128xf32>,
    return
  }
  func.func @transform_0(%arg0: i32) -> (i32, i32) {
    %c0_i32 = arith.constant 0 : i32
    %c0_i32_0 = arith.constant 0 : i32
    return %arg0, %c0_i32 : i32, i32
  }
  func.func @transform_1(%arg0: i32) -> (i32, i32) {
    %c0_i32 = arith.constant 0 : i32
    %c0_i32_0 = arith.constant 0 : i32
    %c0_i32_1 = arith.constant 0 : i32
    return %c0_i32, %c0_i32_0 : i32, i32
  }
  func.func @transform_2(%arg0: i32) -> (i32, i32) {
    %c0_i32 = arith.constant 0 : i32
    %c0_i32_0 = arith.constant 0 : i32
    %c0_i32_1 = arith.constant 0 : i32
    return %c0_i32, %c0_i32_0 : i32, i32
  }
  func.func @transform_3(%arg0: i32) -> (i32, i32) {
    %c0_i32 = arith.constant 0 : i32
    %c0_i32_0 = arith.constant 0 : i32
    return %arg0, %c0_i32 : i32, i32
  }
}

</mosaic_0001>

<llo_original>
// kernel: tpu_custom_call.1
$region0: #{tpu_custom_call.1}
  #allocation0 [shape = 'u32[]', space=smem, size = 0x4, offset = 0x4, fixed_abs, tag = 'smem constant byte address 0x4 - core index']
  #allocation1 [shape = 'u32[72,128]{1,0:T(1,128)}', space=vmem, size = 0x9000, scoped, tag = 'internal scratch']
  %s0 = inlined_call_operand.vmem [shape: f32[200,64], index: 0, kind: input, shape index: {}]
  %s1 = inlined_call_operand.vmem [shape: bf16[64,128], index: 1, kind: input, shape index: {}]
  %s2 = inlined_call_operand.vmem [shape: f32[1,128], index: 2, kind: input, shape index: {}]
  %s3 = inlined_call_operand.hbm [shape: f32[200,128], index: 3, kind: output, shape index: {}]
  %s4 = sld [smem:[#allocation0]]
  $region45: #{tpu_custom_call.1} parent=0
    _
  %s6 = ssub.s32 1, %s4
  %s7 = scalar_select 0, %s6, %s4
  $region1: #{tpu_custom_call.1} parent=0
    #allocation2 [shape = 'u8[106496]{0}', space=vmem, size = 0x1a000, scoped, tag = 'output window, operand 0']
    #allocation3 [shape = 's32[2]{0}', space=sflag, size = 0x8, scoped, tag = 'scoped memory for tpu_custom_call.1']
    %8 = vsyncpa [#allocation3], 0
    %s9 = scalar_lea.sflag [#allocation3], 1
    %10 = vsyncpa %s9, 0
    loop: start=0, step=1, limit=4
    $region2: #{tpu_custom_call.1} parent=1 // loop_pre_header
      _
    $region3: #{tpu_custom_call.1} parent=1 // loop_header
      %s12 = sphi 0, %s16
      %p13 = scmp.ge.s32.totalorder %s12, 4
      %s22 = sphi 0, %s24
      %s25 = sphi 0, %s22
      %s26 = sphi 0, %s25
      %s42 = sphi 0, %s26
      %s46 = sphi 0, %s46
      %s48 = sphi 0, %s46
      %s49 = sphi 0, %s48
      %s63 = sphi 0, %s49
      %s67 = sphi 0, %s67
      %s69 = sphi 0, %s67
      %s70 = sphi 0, %s69
      %s84 = sphi 0, %s70
      %s90 = sphi 0, %s92
      %s93 = sphi 0, %s90
      %s94 = sphi 0, %s93
      %s110 = sphi 0, %s94
    $region4: #{tpu_custom_call.1} parent=1 // loop_header_branch
      %15 = sbr.rel (%p13) target = $region8
    $region5: #{tpu_custom_call.1} parent=1 // loop_body
      %s17 = ssub.s32 %s12, 1
      %s18 = ssub.s32 %s12, 2
      %s19 = sadd.s32 %s12, 1
      %s20 = ssub.s32 %s12, %s19
      %p21 = scmp.eq.s32.totalorder %s20, 0
      %s23 = sadd.s32 %s22, 1
      %s24 = scalar_select %p21, %s22, %s23
      %p27 = pneg %p21
      %p28 = scmp.eq.s32.totalorder %s12, 1
      %p29 = por %p27, %p28
      %p30 = scmp.ne.s32.totalorder %s22, %s25
      %p31 = scmp.eq.s32.totalorder %s12, 0
      %p32 = por %p30, %p31
      %p33 = scmp.ne.s32.totalorder %s22, %s25
      %p34 = scmp.eq.s32.totalorder %s17, 1
      %p35 = por %p33, %p34
      %p36 = scmp.ne.s32.totalorder %s25, %s26
      %p37 = scmp.eq.s32.totalorder %s17, 0
      %p38 = por %p36, %p37
      %p39 = scmp.ne.s32.totalorder %s25, %s26
      %p40 = scmp.eq.s32.totalorder %s18, 1
      %p41 = por %p39, %p40
      %p43 = scmp.ne.s32.totalorder %s26, %s42
      %p44 = scmp.eq.s32.totalorder %s18, 0
      %p45 = por %p43, %p44
      %s47 = sadd.s32 %s46, 1
      %p50 = scmp.eq.s32.totalorder %s12, 1
      %p51 = scmp.ne.s32.totalorder %s46, %s48
      %p52 = scmp.eq.s32.totalorder %s12, 0
      %p53 = por %p51, %p52
      %p54 = scmp.ne.s32.totalorder %s46, %s48
      %p55 = scmp.eq.s32.totalorder %s17, 1
      %p56 = por %p54, %p55
      %p57 = scmp.ne.s32.totalorder %s48, %s49
      %p58 = scmp.eq.s32.totalorder %s17, 0
      %p59 = por %p57, %p58
      %p60 = scmp.ne.s32.totalorder %s48, %s49
      %p61 = scmp.eq.s32.totalorder %s18, 1
      %p62 = por %p60, %p61
      %p64 = scmp.ne.s32.totalorder %s49, %s63
      %p65 = scmp.eq.s32.totalorder %s18, 0
      %p66 = por %p64, %p65
      %s68 = sadd.s32 %s67, 1
      %p71 = scmp.eq.s32.totalorder %s12, 1
      %p72 = scmp.ne.s32.totalorder %s67, %s69
      %p73 = scmp.eq.s32.totalorder %s12, 0
      %p74 = por %p72, %p73
      %p75 = scmp.ne.s32.totalorder %s67, %s69
      %p76 = scmp.eq.s32.totalorder %s17, 1
      %p77 = por %p75, %p76
      %p78 = scmp.ne.s32.totalorder %s69, %s70
      %p79 = scmp.eq.s32.totalorder %s17, 0
      %p80 = por %p78, %p79
      %p81 = scmp.ne.s32.totalorder %s69, %s70
      %p82 = scmp.eq.s32.totalorder %s18, 1
      %p83 = por %p81, %p82
      %p85 = scmp.ne.s32.totalorder %s70, %s84
      %p86 = scmp.eq.s32.totalorder %s18, 0
      %p87 = por %p85, %p86
      %s88 = ssub.s32 %s12, %s19
      %p89 = scmp.eq.s32.totalorder %s88, 0
      %s91 = sadd.s32 %s90, 1
      %s92 = scalar_select %p89, %s90, %s91
      %p95 = pneg %p89
      %p96 = scmp.eq.s32.totalorder %s12, 1
      %p97 = por %p95, %p96
      %p98 = scmp.ne.s32.totalorder %s90, %s93
      %p99 = scmp.eq.s32.totalorder %s12, 0
      %p100 = por %p98, %p99
      %p101 = scmp.ne.s32.totalorder %s90, %s93
      %p102 = scmp.eq.s32.totalorder %s17, 1
      %p103 = por %p101, %p102
      %p104 = scmp.ne.s32.totalorder %s93, %s94
      %p105 = scmp.eq.s32.totalorder %s17, 0
      %p106 = por %p104, %p105
      %p107 = scmp.ne.s32.totalorder %s93, %s94
      %p108 = scmp.eq.s32.totalorder %s18, 1
      %p109 = por %p107, %p108
      %p111 = scmp.ne.s32.totalorder %s94, %s110
      %p112 = scmp.eq.s32.totalorder %s18, 0
      %p113 = por %p111, %p112
      %p114 = scmp.le.s32.totalorder 1, %s12
      %p115 = scmp.lt.s32.totalorder %s12, 3
      %p116 = pnand %p114, %p115
      %p117 = pneg %p116
      // Predicated region
      $region9: #{tpu_custom_call.1} parent=5 // pred_check
        _
      $region10: #{tpu_custom_call.1} parent=5 // pred_check_branch
        %119 = sbr.rel (%p116) target = $region12
      $region11: #{tpu_custom_call.1} parent=5 // pred_region
        %s120 = ssub.s32 %s12, 1
        // Predicated region
        $region13: #{tpu_custom_call.1} parent=11 // pred_check
          %p121 = pneg %p59
        $region14: #{tpu_custom_call.1} parent=11 // pred_check_branch
          %123 = sbr.rel (%p121) target = $region16
        $region15: #{tpu_custom_call.1} parent=11 // pred_region
          _
        $region16: #{tpu_custom_call.1} parent=11 // pred_fallthru
          _
        // Predicated region
        $region17: #{tpu_custom_call.1} parent=11 // pred_check
          %p124 = pneg %p80
        $region18: #{tpu_custom_call.1} parent=11 // pred_check_branch
          %126 = sbr.rel (%p124) target = $region20
        $region19: #{tpu_custom_call.1} parent=11 // pred_region
          _
        $region20: #{tpu_custom_call.1} parent=11 // pred_fallthru
          _
      $region12: #{tpu_custom_call.1} parent=5 // pred_fallthru
        _
      %p127 = scmp.lt.s32.totalorder %s12, 2
      // Predicated region
      $region21: #{tpu_custom_call.1} parent=5 // pred_check
        %p128 = pneg %p127
      $region22: #{tpu_custom_call.1} parent=5 // pred_check_branch
        %130 = sbr.rel (%p128) target = $region24
      $region23: #{tpu_custom_call.1} parent=5 // pred_region
        // Predicated region
        $region25: #{tpu_custom_call.1} parent=23 // pred_check
          %p131 = pneg %p32
        $region26: #{tpu_custom_call.1} parent=23 // pred_check_branch
          %133 = sbr.rel (%p131) target = $region28
        $region27: #{tpu_custom_call.1} parent=23 // pred_region
          %s134 = smul.u32 13, %s12
          %s135 = ssub.s32 25, %s134
          %p136 = scmp.lt.s32.totalorder %s135, 13
          %s137 = scalar_select %p136, %s135, 13
          %s138 = smul.u32 8, %s137
          %p139 = scmp.lt.s32.totalorder %s134, 24
          %s140 = scalar_select %p139, %s134, 24
          %s141 = smul.addr %s140, 8
          %s142 = scalar_lea.vmem %s0, %s141
          %s143 = smul.u32 13, %s12
          %s144 = ssub.s32 25, %s143
          %p145 = scmp.lt.s32.totalorder %s144, 13
          %s146 = scalar_select %p145, %s144, 13
          %s147 = smul.u32 8, %s146
        $region28: #{tpu_custom_call.1} parent=23 // pred_fallthru
          _
      $region24: #{tpu_custom_call.1} parent=5 // pred_fallthru
        _
      %p148 = scmp.le.s32.totalorder 1, %s12
      %p149 = scmp.lt.s32.totalorder %s12, 3
      %p150 = pnand %p148, %p149
      %p151 = pneg %p150
      // Predicated region
      $region29: #{tpu_custom_call.1} parent=5 // pred_check
        _
      $region30: #{tpu_custom_call.1} parent=5 // pred_check_branch
        %153 = sbr.rel (%p150) target = $region32
      $region31: #{tpu_custom_call.1} parent=5 // pred_region
        %s154 = ssub.s32 %s12, 1
        %s155 = smul.u32 13, %s17
        %s156 = ssub.s32 25, %s155
        %p157 = scmp.lt.s32.totalorder %s156, 13
        %s158 = scalar_select %p157, %s156, 13
        %s159 = smul.u32 8, %s158
        %p160 = scmp.lt.s32.totalorder %s155, 24
        %s161 = scalar_select %p160, %s155, 24
        %s162 = smul.addr %s161, 8
        %s163 = scalar_lea.vmem %s0, %s162
        %p164 = pneg %p38
        %p165 = pneg %p35
        %p166 = pneg %p59
        %p167 = pneg %p56
        %p168 = pneg %p80
        %p169 = pneg %p77
        %p170 = pneg %p106
        %p171 = pneg %p103
        %s172 = sand.u32 %s93, 1
        %s173 = scalar_lea.sflag [#allocation3], %s172
        %s174 = sand.u32 %s93, 1
        %s175 = smul.addr %s174, 104
        %s176 = scalar_lea.vmem [#allocation2], %s175
        %s177 = smul.u32 13, %s17
        %s178 = ssub.s32 25, %s177
        %p179 = scmp.lt.s32.totalorder %s178, 13
        %s180 = scalar_select %p179, %s178, 13
        %s181 = smul.u32 8, %s180
        %p182 = scmp.lt.s32.totalorder %s177, 24
        %s183 = scalar_select %p182, %s177, 24
        %s184 = smul.addr %s183, 8
        %s185 = scalar_lea.vmem %s0, %s184
        %s186 = smul.u32 13, %s17
        %s187 = ssub.s32 25, %s186
        %p188 = scmp.lt.s32.totalorder %s187, 13
        %s189 = scalar_select %p188, %s187, 13
        %s190 = smul.u32 8, %s189
        %s191 = smul.u32 13, %s17
        %s192 = ssub.s32 25, %s191
        %p193 = scmp.lt.s32.totalorder %s192, 13
        %s194 = scalar_select %p193, %s192, 13
        %s195 = smul.u32 8, %s194
        %v197 = vld [vmem:[%s185] sm:$0xff]
        %v198 = vld [vmem:[%s185 + $0x8] sm:$0xff]
        %v199 = vld [vmem:[%s185 + $0x10] sm:$0xff]
        %v200 = vld [vmem:[%s185 + $0x18] sm:$0xff]
        %v201 = vld [vmem:[%s185 + $0x20] sm:$0xff]
        %v202 = vld [vmem:[%s185 + $0x28] sm:$0xff]
        %v203 = vld [vmem:[%s185 + $0x30] sm:$0xff]
        %v204 = vld [vmem:[%s185 + $0x38] sm:$0xff]
        %v205 = vld [vmem:[%s185 + $0x40] sm:$0xff]
        %v206 = vld [vmem:[%s185 + $0x48] sm:$0xff]
        %v207 = vld [vmem:[%s185 + $0x50] sm:$0xff]
        %v208 = vld [vmem:[%s185 + $0x58] sm:$0xff]
        %v209 = vld [vmem:[%s185 + $0x60] sm:$0xff]
        %v210 = vpack.c.bf16 %v198, %v197
        %v211 = vpack.c.bf16 %v200, %v199
        %v212 = vpack.c.bf16 %v202, %v201
        %v213 = vpack.c.bf16 %v204, %v203
        %v214 = vpack.c.bf16 %v206, %v205
        %v215 = vpack.c.bf16 %v208, %v207
        %v216 = vpack.c.bf16 %v209, %v209
        %v217 = vld [vmem:[%s1] sm:$0xf]
        %v218 = vld [vmem:[%s1 + $0x4] sm:$0xf]
        %v219 = vld [vmem:[%s1 + $0x8] sm:$0xf]
        %v220 = vld [vmem:[%s1 + $0xc] sm:$0xf]
        %v221 = vld [vmem:[%s1 + $0x10] sm:$0xf]
        %v222 = vld [vmem:[%s1 + $0x14] sm:$0xf]
        %v223 = vld [vmem:[%s1 + $0x18] sm:$0xf]
        %v224 = vld [vmem:[%s1 + $0x1c] sm:$0xf]
        %v225 = vld [vmem:[%s2] sm:$0x1]
        %v227 = vperm.slane %v225, 0
        %v237 = vunpack.c.l.b16 %v217
        %v238 = vunpack.c.l.b16 %v218
        %v239 = vunpack.c.l.b16 %v219
        %v240 = vunpack.c.l.b16 %v220
        %v241 = vunpack.c.l.b16 %v221
        %v242 = vunpack.c.l.b16 %v222
        %v243 = vunpack.c.l.b16 %v223
        %v244 = vunpack.c.l.b16 %v224
        %v245 = vpack.c.b16 %v238, %v237
        %v246 = vpack.c.b16 %v240, %v239
        %v247 = vpack.c.b16 %v242, %v241
        %v248 = vpack.c.b16 %v244, %v243
        %vm253 = vcmask 523264
        %v255 = vsel %vm253, %v210, 0
        %v258 = vsel %vm253, %v211, 0
        %v261 = vsel %vm253, %v212, 0
        %v264 = vsel %vm253, %v213, 0
        %v267 = vsel %vm253, %v214, 0
        %v270 = vsel %vm253, %v215, 0
        %v273 = vsel %vm253, %v216, 0
        %275 = vmatpush.bf16.msra.mxu0 0
        %276 = vmatpush.bf16.msra.mxu0 0
        %277 = vmatpush.bf16.msra.mxu0 0
        %278 = vmatpush.bf16.msra.mxu0 0
        %279 = vmatpush.bf16.msra.mxu0 %v248
        %280 = vmatpush.bf16.msra.mxu0 %v247
        %281 = vmatpush.bf16.msra.mxu0 %v246
        %282 = vmatpush.bf16.msra.mxu0 %v245
        %283 = vmatmul.bf16.gmra.mxu0 %v255
        %v284 = vpop.f32.mrf.mxu0
        %v285 = vadd.f32 %v227, %v284
        %v286 = vpop.f32.mrf.mxu0
        %v287 = vadd.f32 %v227, %v286
        %288 = vmatmul.bf16.gmra.mxu0 %v258
        %v289 = vpop.f32.mrf.mxu0
        %v290 = vadd.f32 %v227, %v289
        %v291 = vpop.f32.mrf.mxu0
        %v292 = vadd.f32 %v227, %v291
        %293 = vmatmul.bf16.gmra.mxu0 %v261
        %v294 = vpop.f32.mrf.mxu0
        %v295 = vadd.f32 %v227, %v294
        %v296 = vpop.f32.mrf.mxu0
        %v297 = vadd.f32 %v227, %v296
        %298 = vmatmul.bf16.gmra.mxu0 %v264
        %v299 = vpop.f32.mrf.mxu0
        %v300 = vadd.f32 %v227, %v299
        %v301 = vpop.f32.mrf.mxu0
        %v302 = vadd.f32 %v227, %v301
        %303 = vmatmul.bf16.gmra.mxu0 %v267
        %v304 = vpop.f32.mrf.mxu0
        %v305 = vadd.f32 %v227, %v304
        %v306 = vpop.f32.mrf.mxu0
        %v307 = vadd.f32 %v227, %v306
        %308 = vmatmul.bf16.gmra.mxu0 %v270
        %v309 = vpop.f32.mrf.mxu0
        %v310 = vadd.f32 %v227, %v309
        %v311 = vpop.f32.mrf.mxu0
        %v312 = vadd.f32 %v227, %v311
        %313 = vmatmul.bf16.gmra.mxu0 %v273
        %v314 = vpop.f32.mrf.mxu0
        %v315 = vadd.f32 %v227, %v314
        %v316 = vpop.f32.mrf.mxu0
        %317 = vdwg.mxu0
        %v318 = vxor.u32 %v285, 2147483648
        %v319 = vxor.u32 %v287, 2147483648
        %v320 = vxor.u32 %v290, 2147483648
        %v321 = vxor.u32 %v292, 2147483648
        %v322 = vxor.u32 %v295, 2147483648
        %v323 = vxor.u32 %v297, 2147483648
        %v324 = vxor.u32 %v300, 2147483648
        %v325 = vxor.u32 %v302, 2147483648
        %v326 = vxor.u32 %v305, 2147483648
        %v327 = vxor.u32 %v307, 2147483648
        %v328 = vxor.u32 %v310, 2147483648
        %v329 = vxor.u32 %v312, 2147483648
        %v330 = vxor.u32 %v315, 2147483648
        %v331 = vmul.f32 %v318, 1.442695
        %v332 = vpow.pop %v331
        %v333 = vmul.f32 %v319, 1.442695
        %v334 = vpow.pop %v333
        %v335 = vmul.f32 %v320, 1.442695
        %v336 = vpow.pop %v335
        %v337 = vmul.f32 %v321, 1.442695
        %v338 = vpow.pop %v337
        %v339 = vmul.f32 %v322, 1.442695
        %v340 = vpow.pop %v339
        %v341 = vmul.f32 %v323, 1.442695
        %v342 = vpow.pop %v341
        %v343 = vmul.f32 %v324, 1.442695
        %v344 = vpow.pop %v343
        %v345 = vmul.f32 %v325, 1.442695
        %v346 = vpow.pop %v345
        %v347 = vmul.f32 %v326, 1.442695
        %v348 = vpow.pop %v347
        %v349 = vmul.f32 %v327, 1.442695
        %v350 = vpow.pop %v349
        %v351 = vmul.f32 %v328, 1.442695
        %v352 = vpow.pop %v351
        %v353 = vmul.f32 %v329, 1.442695
        %v354 = vpow.pop %v353
        %v355 = vmul.f32 %v330, 1.442695
        %v356 = vpow.pop %v355
        %v357 = vadd.f32 %v332, 1.0
        %v358 = vadd.f32 %v334, 1.0
        %v359 = vadd.f32 %v336, 1.0
        %v360 = vadd.f32 %v338, 1.0
        %v361 = vadd.f32 %v340, 1.0
        %v362 = vadd.f32 %v342, 1.0
        %v363 = vadd.f32 %v344, 1.0
        %v364 = vadd.f32 %v346, 1.0
        %v365 = vadd.f32 %v348, 1.0
        %v366 = vadd.f32 %v350, 1.0
        %v367 = vadd.f32 %v352, 1.0
        %v368 = vadd.f32 %v354, 1.0
        %v369 = vadd.f32 %v356, 1.0
        %v370 = vrcp.pop %v357
        %v371 = vmul.f32 %v357, %v370
        %v372 = vsub.f32 1.0, %v371
        %v373 = vmul.f32 %v370, %v372
        %v374 = vadd.f32 %v370, %v373
        %vm375 = vweird.f32 %v357
        %vm376 = vweird.f32 %v370
        %vm377 = vmor %vm375, %vm376
        %v378 = vsel %vm377, %v370, %v374
        %v379 = vand.u32 2147483647, %v357
        %vm380 = vcmp.eq.f32.partialorder %v379, 8.507059e+37
        %v381 = vand.u32 %v357, 2147483648
        %v382 = vor.u32 1.1754944e-38, %v381
        %v383 = vsel %vm380, %v382, %v378
        %v384 = vmul.f32 1.0, %v383
        %v385 = vrcp.pop %v358
        %v386 = vmul.f32 %v358, %v385
        %v387 = vsub.f32 1.0, %v386
        %v388 = vmul.f32 %v385, %v387
        %v389 = vadd.f32 %v385, %v388
        %vm390 = vweird.f32 %v358
        %vm391 = vweird.f32 %v385
        %vm392 = vmor %vm390, %vm391
        %v393 = vsel %vm392, %v385, %v389
        %v394 = vand.u32 2147483647, %v358
        %vm395 = vcmp.eq.f32.partialorder %v394, 8.507059e+37
        %v396 = vand.u32 %v358, 2147483648
        %v397 = vor.u32 1.1754944e-38, %v396
        %v398 = vsel %vm395, %v397, %v393
        %v399 = vmul.f32 1.0, %v398
        %v400 = vrcp.pop %v359
        %v401 = vmul.f32 %v359, %v400
        %v402 = vsub.f32 1.0, %v401
        %v403 = vmul.f32 %v400, %v402
        %v404 = vadd.f32 %v400, %v403
        %vm405 = vweird.f32 %v359
        %vm406 = vweird.f32 %v400
        %vm407 = vmor %vm405, %vm406
        %v408 = vsel %vm407, %v400, %v404
        %v409 = vand.u32 2147483647, %v359
        %vm410 = vcmp.eq.f32.partialorder %v409, 8.507059e+37
        %v411 = vand.u32 %v359, 2147483648
        %v412 = vor.u32 1.1754944e-38, %v411
        %v413 = vsel %vm410, %v412, %v408
        %v414 = vmul.f32 1.0, %v413
        %v415 = vrcp.pop %v360
        %v416 = vmul.f32 %v360, %v415
        %v417 = vsub.f32 1.0, %v416
        %v418 = vmul.f32 %v415, %v417
        %v419 = vadd.f32 %v415, %v418
        %vm420 = vweird.f32 %v360
        %vm421 = vweird.f32 %v415
        %vm422 = vmor %vm420, %vm421
        %v423 = vsel %vm422, %v415, %v419
        %v424 = vand.u32 2147483647, %v360
        %vm425 = vcmp.eq.f32.partialorder %v424, 8.507059e+37
        %v426 = vand.u32 %v360, 2147483648
        %v427 = vor.u32 1.1754944e-38, %v426
        %v428 = vsel %vm425, %v427, %v423
        %v429 = vmul.f32 1.0, %v428
        %v430 = vrcp.pop %v361
        %v431 = vmul.f32 %v361, %v430
        %v432 = vsub.f32 1.0, %v431
        %v433 = vmul.f32 %v430, %v432
        %v434 = vadd.f32 %v430, %v433
        %vm435 = vweird.f32 %v361
        %vm436 = vweird.f32 %v430
        %vm437 = vmor %vm435, %vm436
        %v438 = vsel %vm437, %v430, %v434
        %v439 = vand.u32 2147483647, %v361
        %vm440 = vcmp.eq.f32.partialorder %v439, 8.507059e+37
        %v441 = vand.u32 %v361, 2147483648
        %v442 = vor.u32 1.1754944e-38, %v441
        %v443 = vsel %vm440, %v442, %v438
        %v444 = vmul.f32 1.0, %v443
        %v445 = vrcp.pop %v362
        %v446 = vmul.f32 %v362, %v445
        %v447 = vsub.f32 1.0, %v446
        %v448 = vmul.f32 %v445, %v447
        %v449 = vadd.f32 %v445, %v448
        %vm450 = vweird.f32 %v362
        %vm451 = vweird.f32 %v445
        %vm452 = vmor %vm450, %vm451
        %v453 = vsel %vm452, %v445, %v449
        %v454 = vand.u32 2147483647, %v362
        %vm455 = vcmp.eq.f32.partialorder %v454, 8.507059e+37
        %v456 = vand.u32 %v362, 2147483648
        %v457 = vor.u32 1.1754944e-38, %v456
        %v458 = vsel %vm455, %v457, %v453
        %v459 = vmul.f32 1.0, %v458
        %v460 = vrcp.pop %v363
        %v461 = vmul.f32 %v363, %v460
        %v462 = vsub.f32 1.0, %v461
        %v463 = vmul.f32 %v460, %v462
        %v464 = vadd.f32 %v460, %v463
        %vm465 = vweird.f32 %v363
        %vm466 = vweird.f32 %v460
        %vm467 = vmor %vm465, %vm466
        %v468 = vsel %vm467, %v460, %v464
        %v469 = vand.u32 2147483647, %v363
        %vm470 = vcmp.eq.f32.partialorder %v469, 8.507059e+37
        %v471 = vand.u32 %v363, 2147483648
        %v472 = vor.u32 1.1754944e-38, %v471
        %v473 = vsel %vm470, %v472, %v468
        %v474 = vmul.f32 1.0, %v473
        %v475 = vrcp.pop %v364
        %v476 = vmul.f32 %v364, %v475
        %v477 = vsub.f32 1.0, %v476
        %v478 = vmul.f32 %v475, %v477
        %v479 = vadd.f32 %v475, %v478
        %vm480 = vweird.f32 %v364
        %vm481 = vweird.f32 %v475
        %vm482 = vmor %vm480, %vm481
        %v483 = vsel %vm482, %v475, %v479
        %v484 = vand.u32 2147483647, %v364
        %vm485 = vcmp.eq.f32.partialorder %v484, 8.507059e+37
        %v486 = vand.u32 %v364, 2147483648
        %v487 = vor.u32 1.1754944e-38, %v486
        %v488 = vsel %vm485, %v487, %v483
        %v489 = vmul.f32 1.0, %v488
        %v490 = vrcp.pop %v365
        %v491 = vmul.f32 %v365, %v490
        %v492 = vsub.f32 1.0, %v491
        %v493 = vmul.f32 %v490, %v492
        %v494 = vadd.f32 %v490, %v493
        %vm495 = vweird.f32 %v365
        %vm496 = vweird.f32 %v490
        %vm497 = vmor %vm495, %vm496
        %v498 = vsel %vm497, %v490, %v494
        %v499 = vand.u32 2147483647, %v365
        %vm500 = vcmp.eq.f32.partialorder %v499, 8.507059e+37
        %v501 = vand.u32 %v365, 2147483648
        %v502 = vor.u32 1.1754944e-38, %v501
        %v503 = vsel %vm500, %v502, %v498
        %v504 = vmul.f32 1.0, %v503
        %v505 = vrcp.pop %v366
        %v506 = vmul.f32 %v366, %v505
        %v507 = vsub.f32 1.0, %v506
        %v508 = vmul.f32 %v505, %v507
        %v509 = vadd.f32 %v505, %v508
        %vm510 = vweird.f32 %v366
        %vm511 = vweird.f32 %v505
        %vm512 = vmor %vm510, %vm511
        %v513 = vsel %vm512, %v505, %v509
        %v514 = vand.u32 2147483647, %v366
        %vm515 = vcmp.eq.f32.partialorder %v514, 8.507059e+37
        %v516 = vand.u32 %v366, 2147483648
        %v517 = vor.u32 1.1754944e-38, %v516
        %v518 = vsel %vm515, %v517, %v513
        %v519 = vmul.f32 1.0, %v518
        %v520 = vrcp.pop %v367
        %v521 = vmul.f32 %v367, %v520
        %v522 = vsub.f32 1.0, %v521
        %v523 = vmul.f32 %v520, %v522
        %v524 = vadd.f32 %v520, %v523
        %vm525 = vweird.f32 %v367
        %vm526 = vweird.f32 %v520
        %vm527 = vmor %vm525, %vm526
        %v528 = vsel %vm527, %v520, %v524
        %v529 = vand.u32 2147483647, %v367
        %vm530 = vcmp.eq.f32.partialorder %v529, 8.507059e+37
        %v531 = vand.u32 %v367, 2147483648
        %v532 = vor.u32 1.1754944e-38, %v531
        %v533 = vsel %vm530, %v532, %v528
        %v534 = vmul.f32 1.0, %v533
        %v535 = vrcp.pop %v368
        %v536 = vmul.f32 %v368, %v535
        %v537 = vsub.f32 1.0, %v536
        %v538 = vmul.f32 %v535, %v537
        %v539 = vadd.f32 %v535, %v538
        %vm540 = vweird.f32 %v368
        %vm541 = vweird.f32 %v535
        %vm542 = vmor %vm540, %vm541
        %v543 = vsel %vm542, %v535, %v539
        %v544 = vand.u32 2147483647, %v368
        %vm545 = vcmp.eq.f32.partialorder %v544, 8.507059e+37
        %v546 = vand.u32 %v368, 2147483648
        %v547 = vor.u32 1.1754944e-38, %v546
        %v548 = vsel %vm545, %v547, %v543
        %v549 = vmul.f32 1.0, %v548
        %v550 = vrcp.pop %v369
        %v551 = vmul.f32 %v369, %v550
        %v552 = vsub.f32 1.0, %v551
        %v553 = vmul.f32 %v550, %v552
        %v554 = vadd.f32 %v550, %v553
        %vm555 = vweird.f32 %v369
        %vm556 = vweird.f32 %v550
        %vm557 = vmor %vm555, %vm556
        %v558 = vsel %vm557, %v550, %v554
        %v559 = vand.u32 2147483647, %v369
        %vm560 = vcmp.eq.f32.partialorder %v559, 8.507059e+37
        %v561 = vand.u32 %v369, 2147483648
        %v562 = vor.u32 1.1754944e-38, %v561
        %v563 = vsel %vm560, %v562, %v558
        %v564 = vmul.f32 1.0, %v563
        %565 = vst [vmem:[%s176] sm:$0xff] %v384
        %566 = vst [vmem:[%s176 + $0x8] sm:$0xff] %v399
        %567 = vst [vmem:[%s176 + $0x10] sm:$0xff] %v414
        %568 = vst [vmem:[%s176 + $0x18] sm:$0xff] %v429
        %569 = vst [vmem:[%s176 + $0x20] sm:$0xff] %v444
        %570 = vst [vmem:[%s176 + $0x28] sm:$0xff] %v459
        %571 = vst [vmem:[%s176 + $0x30] sm:$0xff] %v474
        %572 = vst [vmem:[%s176 + $0x38] sm:$0xff] %v489
        %573 = vst [vmem:[%s176 + $0x40] sm:$0xff] %v504
        %574 = vst [vmem:[%s176 + $0x48] sm:$0xff] %v519
        %575 = vst [vmem:[%s176 + $0x50] sm:$0xff] %v534
        %576 = vst [vmem:[%s176 + $0x58] sm:$0xff] %v549
        %577 = vst [vmem:[%s176 + $0x60] sm:$0xff] %v564
        %s578 = sand.u32 %s93, 1
        %s579 = scalar_lea.sflag [#allocation3], %s578
        %s580 = sand.u32 %s93, 1
        %s581 = smul.addr %s580, 104
        %s582 = scalar_lea.vmem [#allocation2], %s581
        // Predicated region
        $region33: #{tpu_custom_call.1} parent=31 // pred_check
          %p583 = pneg %p103
        $region34: #{tpu_custom_call.1} parent=31 // pred_check_branch
          %585 = sbr.rel (%p583) target = $region36
        $region35: #{tpu_custom_call.1} parent=31 // pred_region
          %s586 = smul.u32 13, %s17
          %s587 = ssub.s32 25, %s586
          %p588 = scmp.lt.s32.totalorder %s587, 13
          %s589 = scalar_select %p588, %s587, 13
          %s590 = smul.u32 8, %s589
          %s591 = ssub.s32 104, %s590
          %s592 = sshll.u32 %s591, 4
          %593 = vsyncadd %s579, %s592
          %p594 = scmp.ne.s32.totalorder 0, %s590
          %s595 = smul.addr %s586, 8
          %s596 = scalar_lea.hbm %s3, %s595
          %s597 = smul.u32 8, %s589
          %s598 = sshll.u32 %s582, 4
          %s599 = int_to_ptr.vmem [resolvable:$true] %s598
          %s600 = sshll.u32 %s596, 4
          %s601 = int_to_ptr.hbm [resolvable:$true] %s600
          %s602 = sshll.u32 %s597, 4
          %606 = dma.vmem_to_hbm [thread:$0]  (%p594), %s599, %s602, %s601, %s579, 128, 128, 8
        $region36: #{tpu_custom_call.1} parent=31 // pred_fallthru
          _
      $region32: #{tpu_custom_call.1} parent=5 // pred_fallthru
        _
      %p607 = scmp.le.s32.totalorder 2, %s12
      // Predicated region
      $region37: #{tpu_custom_call.1} parent=5 // pred_check
        %p608 = pneg %p607
      $region38: #{tpu_custom_call.1} parent=5 // pred_check_branch
        %610 = sbr.rel (%p608) target = $region40
      $region39: #{tpu_custom_call.1} parent=5 // pred_region
        %s611 = ssub.s32 %s12, 2
        // Predicated region
        $region41: #{tpu_custom_call.1} parent=39 // pred_check
          %p612 = pneg %p109
        $region42: #{tpu_custom_call.1} parent=39 // pred_check_branch
          %614 = sbr.rel (%p612) target = $region44
        $region43: #{tpu_custom_call.1} parent=39 // pred_region
          %s615 = sand.u32 %s94, 1
          %s616 = scalar_lea.sflag [#allocation3], %s615
          %s617 = sand.u32 %s94, 1
          %s618 = smul.addr %s617, 104
          %s619 = scalar_lea.vmem [#allocation2], %s618
          %621 = dma.done %s616, 1664
        $region44: #{tpu_custom_call.1} parent=39 // pred_fallthru
          _
      $region40: #{tpu_custom_call.1} parent=5 // pred_fallthru
        _
    $region6: #{tpu_custom_call.1} parent=1 // loop_footer
      %s16 = sadd.s32 1, %s12
    $region7: #{tpu_custom_call.1} parent=1 // loop_footer_branch
      %11 = sbr.rel target = $region3
    $region8: #{tpu_custom_call.1} parent=1 // loop_exit
      _
    %622 = vsyncpa [#allocation3], 1
    %s623 = scalar_lea.sflag [#allocation3], 1
    %624 = vsyncpa %s623, 1

</llo_original>
